<compile_context>
chip_gen: v7x
topology: tpu7x:2x2x1
jax: 0.10.0
libtpu: 0.0.40
codegen_flags: <defaults>
</compile_context>

<pallas_src>
import jax
import jax.numpy as jnp
from jax.experimental import pallas as pl
from jax.experimental.pallas import tpu as pltpu


def _round_up(x, m):
    return ((x + m - 1) // m) * m


def _nonlinear_head_kernel(x_ref, w1_ref, b1_ref, w2_ref, b2_ref, o_ref):
    # x_ref : (TB, Dp)   activation row tile (native dtype; cast to the MXU dtype here)
    # w1_ref: (Dp, Hp)   linear1 weight, pre-transposed + padded (resident across grid)
    # b1_ref: (1, Hp)    linear1 bias, float32 (resident)
    # w2_ref: (Hp, Op)   linear2 weight, pre-transposed + padded (resident)
    # b2_ref: (1, Op)    linear2 bias, float32 (resident)
    # o_ref : (TB, Op)   output row tile
    x = x_ref[...].astype(w1_ref.dtype)
    h = jnp.dot(x, w1_ref[...], preferred_element_type=jnp.float32)
    h = h + b1_ref[...]                              # f32 bias on f32 accumulator
    # TODO(synk): norm='batch' / norm='layer' branches not implemented; module default is Identity.
    # Numerically stable softplus, exactly two EUP ops (exp + log).  log1p would be a
    # hair more accurate near h~0 but log(1+z) with z in (0,1] is already fine here.
    h = jnp.maximum(h, 0.0) + jnp.log(1.0 + jnp.exp(-jnp.abs(h)))
    y = jnp.dot(h.astype(w2_ref.dtype), w2_ref[...],
                preferred_element_type=jnp.float32)
    o_ref[...] = (y + b2_ref[...]).astype(o_ref.dtype)


def prepare_nonlinear_head_params(w1, b1, w2, b2, *, param_dtype=jnp.bfloat16):
    """One-time (init-time) layout prep: transpose weights to (in, out) and pad all
    feature dims to lane multiples of 128; store weights in `param_dtype` (bf16 by
    default -> half the weight HBM bytes + native MXU rate), biases in float32.

    CORRECTNESS NOTE: rows [hidden:h_pad] of w2t MUST remain exactly zero.  The padded
    hidden columns of h are 0, softplus(0)=log(2)~0.693, and only the zero-padded W2
    rows cancel that contribution in the second matmul.
    """
    hidden, input_dim = w1.shape
    out_dim, hidden2 = w2.shape
    assert hidden2 == hidden and b1.shape == (hidden,) and b2.shape == (out_dim,)

    d_pad = _round_up(input_dim, 128)
    h_pad = _round_up(hidden, 128)
    o_pad = _round_up(out_dim, 128)

    w1t = jnp.zeros((d_pad, h_pad), param_dtype).at[:input_dim, :hidden].set(
        w1.T.astype(param_dtype))
    b1p = jnp.zeros((1, h_pad), jnp.float32).at[:, :hidden].set(b1.astype(jnp.float32))
    w2t = jnp.zeros((h_pad, o_pad), param_dtype).at[:hidden, :out_dim].set(
        w2.T.astype(param_dtype))
    b2p = jnp.zeros((1, o_pad), jnp.float32).at[:, :out_dim].set(b2.astype(jnp.float32))

    return dict(w1t=w1t, b1=b1p, w2t=w2t, b2=b2p,
                input_dim=input_dim, out_dim=out_dim)


def _vmem_capacity_bytes():
    try:
        return int(pltpu.get_tpu_info().vmem_capacity_bytes)
    except Exception:
        return 64 << 20   # conservative fallback (v7x per-TensorCore VMEM)


def _working_set_bytes(tb, d_pad, h_pad, o_pad, x_item, out_item, w_item):
    """Per-grid-step VMEM estimate, including the f32 hidden intermediate."""
    weights = 2 * (d_pad * h_pad + h_pad * o_pad) * w_item        # default double-buffered
    biases = 2 * (h_pad + o_pad) * 4
    acts = 2 * tb * (d_pad * x_item + o_pad * out_item)           # pipelined x / out tiles
    interm = tb * h_pad * (4 + w_item) + tb * o_pad * 4           # f32 h + narrow h copy + f32 y
    return weights + biases + acts + interm


def _choose_row_tile(B, d_pad, h_pad, o_pad, x_item, out_item, w_item, budget):
    b_min = _round_up(max(B, 8), 8)
    if b_min <= 1024:
        # Single grid step over the whole (padded) batch, with smaller fallbacks if the
        # working set would not fit VMEM.
        candidates = [b_min] + [t for t in (512, 256, 128, 64, 32, 16, 8) if t < b_min]
    else:
        # Large batch: MXU-friendly multiples of 256 so each grid step / TensorCore gets a
        # full-width tile and x DMA pipelines against MXU compute.
        candidates = [512, 256, 128, 64, 32, 16, 8]

    def fits(t):
        return _working_set_bytes(t, d_pad, h_pad, o_pad, x_item, out_item, w_item) <= budget

    return next((t for t in candidates if fits(t)), 8)


def nonlinear_head_forward(x, params):
    """x: (B, input_dim) -> (B, out_dim). Matches NonLinearHead.forward (norm='none')."""
    B, D = x.shape
    assert D == params["input_dim"]

    w1t, b1 = params["w1t"], params["b1"]
    w2t, b2 = params["w2t"], params["b2"]
    d_pad, h_pad = w1t.shape
    o_pad = w2t.shape[1]
    out_dim = params["out_dim"]
    out_dtype = x.dtype

    w_item = jnp.dtype(w1t.dtype).itemsize
    x_item = jnp.dtype(x.dtype).itemsize
    out_item = jnp.dtype(out_dtype).itemsize

    vmem_cap = _vmem_capacity_bytes()
    tb = _choose_row_tile(B, d_pad, h_pad, o_pad, x_item, out_item, w_item,
                          budget=int(0.6 * vmem_cap))
    b_pad = _round_up(max(B, 8), tb)
    n_rows = b_pad // tb

    # Avoid the per-call padded x copy (an extra HBM round trip) whenever x is already
    # (8,128)-aligned; the kernel casts to the MXU dtype in-register.  Otherwise pad and
    # cast in a single op so the materialized copy is already in the narrow dtype.
    if b_pad == B and d_pad == D:
        x_in = x
    else:
        x_in = jnp.zeros((b_pad, d_pad), w1t.dtype).at[:B, :D].set(x.astype(w1t.dtype))
    x_in_item = jnp.dtype(x_in.dtype).itemsize

    ws = _working_set_bytes(tb, d_pad, h_pad, o_pad, x_in_item, out_item, w_item)
    vmem_limit = int(min(max(ws + (2 << 20), 16 << 20), int(0.75 * vmem_cap)))

    # Advisory cost estimate (no linear1 recompute anymore).
    flops = 2 * b_pad * (d_pad * h_pad + h_pad * o_pad)
    transcendentals = 2 * b_pad * h_pad                      # exp + log per hidden element
    bytes_accessed = (x_in.size * x_in_item
                      + (w1t.size + w2t.size) * w_item
                      + (b1.size + b2.size) * 4
                      + b_pad * o_pad * out_item)

    out = pl.pallas_call(
        _nonlinear_head_kernel,
        out_shape=jax.ShapeDtypeStruct((b_pad, o_pad), out_dtype),
        grid_spec=pltpu.PrefetchScalarGridSpec(
            num_scalar_prefetch=0,
            grid=(n_rows,),
            in_specs=[
                pl.BlockSpec((tb, d_pad), lambda i: (i, 0)),     # x row tile
                pl.BlockSpec((d_pad, h_pad), lambda i: (0, 0)),  # W1^T (resident)
                pl.BlockSpec((1, h_pad), lambda i: (0, 0)),      # b1 (resident)
                pl.BlockSpec((h_pad, o_pad), lambda i: (0, 0)),  # W2^T (resident)
                pl.BlockSpec((1, o_pad), lambda i: (0, 0)),      # b2 (resident)
            ],
            out_specs=pl.BlockSpec((tb, o_pad), lambda i: (i, 0)),
        ),
        compiler_params=pltpu.CompilerParams(
            dimension_semantics=("parallel",),   # row tiles are independent (megacore-friendly)
            vmem_limit_bytes=vmem_limit,
        ),
        cost_estimate=pl.CostEstimate(
            flops=flops,
            transcendentals=transcendentals,
            bytes_accessed=bytes_accessed,
        ),
    )(x_in, w1t, b1, w2t, b2)

    return out[:B, :out_dim]


if __name__ == "__main__":
    key = jax.random.PRNGKey(0)
    k_x, k_w1, k_b1, k_w2, k_b2 = jax.random.split(key, 5)

    batch, input_dim, out_dim = 2, 32, 16
    hidden = input_dim  # NonLinearHead default: hidden = input_dim when not given

    x = jax.random.normal(k_x, (batch, input_dim), dtype=jnp.float32)

    bound1 = 1.0 / jnp.sqrt(input_dim)
    w1 = jax.random.uniform(k_w1, (hidden, input_dim),
                            minval=-bound1, maxval=bound1, dtype=jnp.float32)
    b1 = jax.random.uniform(k_b1, (hidden,),
                            minval=-bound1, maxval=bound1, dtype=jnp.float32)
    bound2 = 1.0 / jnp.sqrt(hidden)
    w2 = jax.random.uniform(k_w2, (out_dim, hidden),
                            minval=-bound2, maxval=bound2, dtype=jnp.float32)
    b2 = jax.random.uniform(k_b2, (out_dim,),
                            minval=-bound2, maxval=bound2, dtype=jnp.float32)

    def ref_forward(x, w1, b1, w2, b2, compute_dtype=jnp.float32):
        """Pure-JAX reference of the PyTorch forward (linear1 -> Identity -> Softplus ->
        linear2), with MXU inputs rounded to `compute_dtype` to mirror the kernel's
        precision; accumulation stays float32."""
        f32 = jnp.float32
        xc = x.astype(compute_dtype).astype(f32)
        w1c = w1.astype(compute_dtype).astype(f32)
        w2c = w2.astype(compute_dtype).astype(f32)
        h = xc @ w1c.T + b1.astype(f32)
        h = jnp.logaddexp(h, 0.0)                    # softplus
        hc = h.astype(compute_dtype).astype(f32)
        return hc @ w2c.T + b2.astype(f32)

    # 1) Default fast path: bf16 weights / MXU inputs, f32 accumulation.
    params_bf16 = prepare_nonlinear_head_params(w1, b1, w2, b2)           # bf16 default
    out_bf16 = jax.block_until_ready(nonlinear_head_forward(x, params_bf16))
    ref_bf16 = ref_forward(x, w1, b1, w2, b2, jnp.bfloat16)
    assert out_bf16.shape == (batch, out_dim)
    assert jnp.allclose(out_bf16, ref_bf16, atol=5e-3, rtol=5e-3)

    # 2) Full-precision path: f32 params, checked tightly against the f32 reference.
    params_f32 = prepare_nonlinear_head_params(w1, b1, w2, b2, param_dtype=jnp.float32)
    out_f32 = jax.block_until_ready(nonlinear_head_forward(x, params_f32))
    ref_f32 = ref_forward(x, w1, b1, w2, b2, jnp.float32)
    assert jnp.allclose(out_f32, ref_f32, atol=5e-4, rtol=5e-4)

    print("KERNEL_OK")
</pallas_src>

<mosaic_0001>
module attributes {stable_mosaic.version = 11 : i64} {
  func.func @_nonlinear_head_kernel(%arg0: i32, %arg1: memref<8x128xbf16, #tpu.memory_space<vmem>>, %arg2: memref<128x128xbf16, #tpu.memory_space<vmem>>, %arg3: memref<1x128xf32, #tpu.memory_space<vmem>>, %arg4: memref<128x128xbf16, #tpu.memory_space<vmem>>, %arg5: memref<1x128xf32, #tpu.memory_space<vmem>>, %arg6: memref<8x128xf32, #tpu.memory_space<vmem>>) attributes {dimension_semantics = [#tpu.dimension_semantics<parallel>], iteration_bounds = array<i64: 1>, scalar_prefetch = 0 : i64, scratch_operands = 0 : i64, tpu.core_type = #tpu.core_type<tc>, window_params = [{transform_indices = @transform_0, window_bounds = array<i64: 8, 128>}, {pipeline_mode = #tpu.pipeline_mode<synchronous>, transform_indices = @transform_1, window_bounds = array<i64: 128, 128>}, {pipeline_mode = #tpu.pipeline_mode<synchronous>, transform_indices = @transform_2, window_bounds = array<i64: 1, 128>}, {pipeline_mode = #tpu.pipeline_mode<synchronous>, transform_indices = @transform_3, window_bounds = array<i64: 128, 128>}, {pipeline_mode = #tpu.pipeline_mode<synchronous>, transform_indices = @transform_4, window_bounds = array<i64: 1, 128>}, {transform_indices = @transform_5, window_bounds = array<i64: 8, 128>}]} {
    %c0 = arith.constant 0 : index
    %c0_0 = arith.constant 0 : index
    %0 = vector.load %arg1[%c0, %c0_0] : memref<8x128xbf16, #tpu.memory_space<vmem>>, vector<8x128xbf16>
    %c0_1 = arith.constant 0 : index
    %c0_2 = arith.constant 0 : index
    %1 = vector.load %arg2[%c0_1, %c0_2] : memref<128x128xbf16, #tpu.memory_space<vmem>>, vector<128x128xbf16>
    %cst = arith.constant dense<0.000000e+00> : vector<8x128xf32>
    %2 = tpu.matmul %0, %1, %cst {dimension_numbers = #tpu.dot_dimension_numbers<[1], [0], [0], [1], [0, 0, 1, 1], [], []>} : vector<8x128xbf16>, vector<128x128xbf16>, vector<8x128xf32> -> vector<8x128xf32>
    %c0_3 = arith.constant 0 : index
    %c0_4 = arith.constant 0 : index
    %3 = vector.load %arg3[%c0_3, %c0_4] : memref<1x128xf32, #tpu.memory_space<vmem>>, vector<1x128xf32>
    %4 = vector.broadcast %3 : vector<1x128xf32> to vector<8x128xf32>
    %5 = arith.addf %2, %4 : vector<8x128xf32>
    %cst_5 = arith.constant 0.000000e+00 : f32
    %6 = vector.broadcast %cst_5 : f32 to vector<8x128xf32>
    %7 = arith.maximumf %5, %6 : vector<8x128xf32>
    %8 = math.absf %5 : vector<8x128xf32>
    %cst_6 = arith.constant 0.000000e+00 : f32
    %9 = vector.broadcast %cst_6 : f32 to vector<8x128xf32>
    %10 = arith.subf %9, %8 : vector<8x128xf32>
    %11 = math.exp %10 : vector<8x128xf32>
    %cst_7 = arith.constant 1.000000e+00 : f32
    %12 = vector.broadcast %cst_7 : f32 to vector<8x128xf32>
    %13 = arith.addf %12, %11 : vector<8x128xf32>
    %14 = math.log %13 : vector<8x128xf32>
    %15 = arith.addf %7, %14 : vector<8x128xf32>
    %16 = arith.truncf %15 : vector<8x128xf32> to vector<8x128xbf16>
    %c0_8 = arith.constant 0 : index
    %c0_9 = arith.constant 0 : index
    %17 = vector.load %arg4[%c0_8, %c0_9] : memref<128x128xbf16, #tpu.memory_space<vmem>>, vector<128x128xbf16>
    %cst_10 = arith.constant dense<0.000000e+00> : vector<8x128xf32>
    %18 = tpu.matmul %16, %17, %cst_10 {dimension_numbers = #tpu.dot_dimension_numbers<[1], [0], [0], [1], [0, 0, 1, 1], [], []>} : vector<8x128xbf16>, vector<128x128xbf16>, vector<8x128xf32> -> vector<8x128xf32>
    %c0_11 = arith.constant 0 : index
    %c0_12 = arith.constant 0 : index
    %19 = vector.load %arg5[%c0_11, %c0_12] : memref<1x128xf32, #tpu.memory_space<vmem>>, vector<1x128xf32>
    %20 = vector.broadcast %19 : vector<1x128xf32> to vector<8x128xf32>
    %21 = arith.addf %18, %20 : vector<8x128xf32>
    %c0_13 = arith.constant 0 : index
    %c0_14 = arith.constant 0 : index
    %22 = vector.load %arg6[%c0_13, %c0_14] : memref<8x128xf32, #tpu.memory_space<vmem>>, vector<8x128xf32>
    tpu.vector_store %arg6[%c0_13, %c0_14], %21 {strides = array<i32>} : memref<8x128xf32, #tpu.memory_space<vmem>>, vector<8x128xf32>,
    return
  }
  func.func @transform_0(%arg0: i32) -> (i32, i32) {
    %c0_i32 = arith.constant 0 : i32
    %c0_i32_0 = arith.constant 0 : i32
    return %arg0, %c0_i32 : i32, i32
  }
  func.func @transform_1(%arg0: i32) -> (i32, i32) {
    %c0_i32 = arith.constant 0 : i32
    %c0_i32_0 = arith.constant 0 : i32
    %c0_i32_1 = arith.constant 0 : i32
    return %c0_i32, %c0_i32_0 : i32, i32
  }
  func.func @transform_2(%arg0: i32) -> (i32, i32) {
    %c0_i32 = arith.constant 0 : i32
    %c0_i32_0 = arith.constant 0 : i32
    %c0_i32_1 = arith.constant 0 : i32
    return %c0_i32, %c0_i32_0 : i32, i32
  }
  func.func @transform_3(%arg0: i32) -> (i32, i32) {
    %c0_i32 = arith.constant 0 : i32
    %c0_i32_0 = arith.constant 0 : i32
    %c0_i32_1 = arith.constant 0 : i32
    return %c0_i32, %c0_i32_0 : i32, i32
  }
  func.func @transform_4(%arg0: i32) -> (i32, i32) {
    %c0_i32 = arith.constant 0 : i32
    %c0_i32_0 = arith.constant 0 : i32
    %c0_i32_1 = arith.constant 0 : i32
    return %c0_i32, %c0_i32_0 : i32, i32
  }
  func.func @transform_5(%arg0: i32) -> (i32, i32) {
    %c0_i32 = arith.constant 0 : i32
    %c0_i32_0 = arith.constant 0 : i32
    return %arg0, %c0_i32 : i32, i32
  }
}

</mosaic_0001>

<llo_original>
// kernel: tpu_custom_call.1
$region0: #{tpu_custom_call.1}
  #allocation0 [shape = 'u32[]', space=smem, size = 0x4, offset = 0x4, fixed_abs, tag = 'smem constant byte address 0x4 - core index']
  #allocation1 [shape = 'u32[144,128]{1,0:T(1,128)}', space=vmem, size = 0x12000, scoped, tag = 'internal scratch']
  %s0 = inlined_call_operand.hbm [shape: bf16[8,128], index: 0, kind: input, shape index: {}]
  %s1 = inlined_call_operand.hbm [shape: bf16[128,128], index: 1, kind: input, shape index: {}]
  %s2 = inlined_call_operand.vmem [shape: f32[1,128], index: 2, kind: input, shape index: {}]
  %s3 = inlined_call_operand.hbm [shape: bf16[128,128], index: 3, kind: input, shape index: {}]
  %s4 = inlined_call_operand.vmem [shape: f32[1,128], index: 4, kind: input, shape index: {}]
  %s5 = inlined_call_operand.hbm [shape: f32[8,128], index: 5, kind: output, shape index: {}]
  %s6 = sld [smem:[#allocation0]]
  $region42: #{tpu_custom_call.1} parent=0
    _
  %s8 = ssub.s32 1, %s6
  %s9 = scalar_select 0, %s8, %s6
  $region1: #{tpu_custom_call.1} parent=0
    #allocation2 [shape = 'u8[2048]{0}', space=vmem, size = 0x800, scoped, tag = 'input window, operand 0, single buffered']
    #allocation3 [shape = 's32[1]{0}', space=sflag, size = 0x4, scoped, tag = 'scoped memory for tpu_custom_call.1']
    #allocation4 [shape = 's32[1]{0}', space=sflag, size = 0x4, scoped, tag = 'scoped memory for tpu_custom_call.1']
    #allocation5 [shape = 'u8[32768]{0}', space=vmem, size = 0x8000, scoped, tag = 'input window, operand 1, single buffered']
    #allocation6 [shape = 's32[1]{0}', space=sflag, size = 0x4, scoped, tag = 'scoped memory for tpu_custom_call.1']
    #allocation7 [shape = 'u8[32768]{0}', space=vmem, size = 0x8000, scoped, tag = 'input window, operand 3, single buffered']
    #allocation8 [shape = 'u8[4096]{0}', space=vmem, size = 0x1000, scoped, tag = 'output window, operand 0, single buffered']
    %10 = vsyncpa [#allocation3], 0
    %11 = vsyncpa [#allocation6], 0
    %12 = vsyncpa [#allocation4], 0
    // Predicated region
    $region2: #{tpu_custom_call.1} parent=1 // pred_check
      _
    $region3: #{tpu_custom_call.1} parent=1 // pred_check_branch
      %14 = sbr.rel (0) target = $region5
    $region4: #{tpu_custom_call.1} parent=1 // pred_region
      %s16 = ssub.s32 64, 64
      %17 = vsyncadd [#allocation3], %s16
      %s19 = sshll.u32 [#allocation2], 4
      %s20 = int_to_ptr.vmem [resolvable:$true] %s19
      %22 = dma.hbm_to_vmem [thread:$0]  %s0, 64, %s20, [#allocation3]
    $region5: #{tpu_custom_call.1} parent=1 // pred_fallthru
      _
    // Predicated region
    $region6: #{tpu_custom_call.1} parent=1 // pred_check
      _
    $region7: #{tpu_custom_call.1} parent=1 // pred_check_branch
      %24 = sbr.rel (0) target = $region9
    $region8: #{tpu_custom_call.1} parent=1 // pred_region
      %s26 = ssub.s32 1024, 1024
      %27 = vsyncadd [#allocation6], %s26
      %s28 = sshll.u32 [#allocation5], 4
      %s29 = int_to_ptr.vmem [resolvable:$true] %s28
      %34 = dma.hbm_to_vmem [thread:$0]  %s1, 1024, %s29, [#allocation6], 64, 64, 4
    $region9: #{tpu_custom_call.1} parent=1 // pred_fallthru
      _
    // Predicated region
    $region10: #{tpu_custom_call.1} parent=1 // pred_check
      _
    $region11: #{tpu_custom_call.1} parent=1 // pred_check_branch
      %36 = sbr.rel (0) target = $region13
    $region12: #{tpu_custom_call.1} parent=1 // pred_region
      _
    $region13: #{tpu_custom_call.1} parent=1 // pred_fallthru
      _
    // Predicated region
    $region14: #{tpu_custom_call.1} parent=1 // pred_check
      _
    $region15: #{tpu_custom_call.1} parent=1 // pred_check_branch
      %38 = sbr.rel (0) target = $region17
    $region16: #{tpu_custom_call.1} parent=1 // pred_region
      %s40 = ssub.s32 1024, 1024
      %41 = vsyncadd [#allocation6], %s40
      %s42 = sshll.u32 [#allocation7], 4
      %s43 = int_to_ptr.vmem [resolvable:$true] %s42
      %48 = dma.hbm_to_vmem [thread:$0]  %s3, 1024, %s43, [#allocation6], 64, 64, 4
    $region17: #{tpu_custom_call.1} parent=1 // pred_fallthru
      _
    // Predicated region
    $region18: #{tpu_custom_call.1} parent=1 // pred_check
      _
    $region19: #{tpu_custom_call.1} parent=1 // pred_check_branch
      %50 = sbr.rel (0) target = $region21
    $region20: #{tpu_custom_call.1} parent=1 // pred_region
      _
    $region21: #{tpu_custom_call.1} parent=1 // pred_fallthru
      _
    // Predicated region
    $region22: #{tpu_custom_call.1} parent=1 // pred_check
      _
    $region23: #{tpu_custom_call.1} parent=1 // pred_check_branch
      %52 = sbr.rel (0) target = $region25
    $region24: #{tpu_custom_call.1} parent=1 // pred_region
      %53 = dma.done [#allocation3], 64
    $region25: #{tpu_custom_call.1} parent=1 // pred_fallthru
      _
    // Predicated region
    $region26: #{tpu_custom_call.1} parent=1 // pred_check
      _
    $region27: #{tpu_custom_call.1} parent=1 // pred_check_branch
      %55 = sbr.rel (0) target = $region29
    $region28: #{tpu_custom_call.1} parent=1 // pred_region
      %56 = dma.done [#allocation6], 1024
    $region29: #{tpu_custom_call.1} parent=1 // pred_fallthru
      _
    // Predicated region
    $region30: #{tpu_custom_call.1} parent=1 // pred_check
      _
    $region31: #{tpu_custom_call.1} parent=1 // pred_check_branch
      %58 = sbr.rel (0) target = $region33
    $region32: #{tpu_custom_call.1} parent=1 // pred_region
      %59 = dma.done [#allocation6], 1024
    $region33: #{tpu_custom_call.1} parent=1 // pred_fallthru
      _
    %v61 = vld [vmem:[#allocation2] sm:$0xf]
    %v62 = vld [vmem:[#allocation5] sm:$0xf]
    %v63 = vld [vmem:[#allocation5 + $0x4] sm:$0xf]
    %v64 = vld [vmem:[#allocation5 + $0x8] sm:$0xf]
    %v65 = vld [vmem:[#allocation5 + $0xc] sm:$0xf]
    %v66 = vld [vmem:[#allocation5 + $0x10] sm:$0xf]
    %v67 = vld [vmem:[#allocation5 + $0x14] sm:$0xf]
    %v68 = vld [vmem:[#allocation5 + $0x18] sm:$0xf]
    %v69 = vld [vmem:[#allocation5 + $0x1c] sm:$0xf]
    %v70 = vld [vmem:[#allocation5 + $0x20] sm:$0xf]
    %v71 = vld [vmem:[#allocation5 + $0x24] sm:$0xf]
    %v72 = vld [vmem:[#allocation5 + $0x28] sm:$0xf]
    %v73 = vld [vmem:[#allocation5 + $0x2c] sm:$0xf]
    %v74 = vld [vmem:[#allocation5 + $0x30] sm:$0xf]
    %v75 = vld [vmem:[#allocation5 + $0x34] sm:$0xf]
    %v76 = vld [vmem:[#allocation5 + $0x38] sm:$0xf]
    %v77 = vld [vmem:[#allocation5 + $0x3c] sm:$0xf]
    %v78 = vld [vmem:[%s2] sm:$0x1]
    %v80 = vlaneseq
    %v81 = vshrl.u32 %v80, 7
    %v82 = vsub.s32 0, %v81
    %v83 = vrot.slane %v78, %v82
    %v101 = vunpack.c.l.b16 %v62
    %v102 = vunpack.c.l.b16 %v63
    %v103 = vunpack.c.l.b16 %v64
    %v104 = vunpack.c.l.b16 %v65
    %v105 = vunpack.c.l.b16 %v66
    %v106 = vunpack.c.l.b16 %v67
    %v107 = vunpack.c.l.b16 %v68
    %v108 = vunpack.c.l.b16 %v69
    %v109 = vunpack.c.l.b16 %v70
    %v110 = vunpack.c.l.b16 %v71
    %v111 = vunpack.c.l.b16 %v72
    %v112 = vunpack.c.l.b16 %v73
    %v113 = vunpack.c.l.b16 %v74
    %v114 = vunpack.c.l.b16 %v75
    %v115 = vunpack.c.l.b16 %v76
    %v116 = vunpack.c.l.b16 %v77
    %v117 = vpack.c.b16 %v102, %v101
    %v118 = vpack.c.b16 %v104, %v103
    %v119 = vpack.c.b16 %v106, %v105
    %v120 = vpack.c.b16 %v108, %v107
    %v121 = vpack.c.b16 %v110, %v109
    %v122 = vpack.c.b16 %v112, %v111
    %v123 = vpack.c.b16 %v114, %v113
    %v124 = vpack.c.b16 %v116, %v115
    %133 = vmatprep.subr.bf16.mxu0 0
    %134 = vmatpush1.bf16.msra.mxu0 %v117
    %135 = vmatprep.subr.bf16.mxu0 0
    %136 = vmatpush1.bf16.msra.mxu0 %v118
    %137 = vmatprep.subr.bf16.mxu0 0
    %138 = vmatpush1.bf16.msra.mxu0 %v119
    %139 = vmatprep.subr.bf16.mxu0 0
    %140 = vmatpush1.bf16.msra.mxu0 %v120
    %141 = vmatprep.subr.bf16.mxu0 0
    %142 = vmatpush1.bf16.msra.mxu0 %v121
    %143 = vmatprep.subr.bf16.mxu0 0
    %144 = vmatpush1.bf16.msra.mxu0 %v122
    %145 = vmatprep.subr.bf16.mxu0 0
    %146 = vmatpush1.bf16.msra.mxu0 %v123
    %147 = vmatprep.subr.bf16.mxu0 0
    %148 = vmatpush1.bf16.msra.mxu0 %v124
    %149 = vmatprep.subr.bf16.mxu0 0
    %150 = vmatpush1.bf16.msra.mxu0 0
    %151 = vmatprep.subr.bf16.mxu0 0
    %152 = vmatpush1.bf16.msra.mxu0 0
    %153 = vmatprep.subr.bf16.mxu0 0
    %154 = vmatpush1.bf16.msra.mxu0 0
    %155 = vmatprep.subr.bf16.mxu0 0
    %156 = vmatpush1.bf16.msra.mxu0 0
    %157 = vmatprep.subr.bf16.mxu0 0
    %158 = vmatpush1.bf16.msra.mxu0 0
    %159 = vmatprep.subr.bf16.mxu0 0
    %160 = vmatpush1.bf16.msra.mxu0 0
    %161 = vmatprep.subr.bf16.mxu0 0
    %162 = vmatpush1.bf16.msra.mxu0 0
    %163 = vmatprep.subr.bf16.mxu0 0
    %164 = vmatpush1.bf16.msra.mxu0 0
    %165 = vmatprep.mubr.bf16.mxu0 0
    %166 = vmatmul.mubr.bf16.gmra.mrb[0].mxu0 %v61
    %v167 = vpop.f32.mrb[0].mxu0
    %v168 = vadd.f32 %v83, %v167
    %v169 = vpop.f32.mrb[0].mxu0
    %v170 = vpop.f32.mrb[0].mxu0
    %v171 = vpop.f32.mrb[0].mxu0
    %172 = vdwg.mxu0
    %v173 = vmax.f32 %v168, 0.0
    %v174 = vand.u32 2147483647, %v168
    %v175 = vsub.f32 0.0, %v174
    %v176 = vmul.f32 %v175, 1.442695
    %v177 = vpow.pop %v176
    %v178 = vadd.f32 %v177, 1.0
    %v179 = vlog2.pop %v178
    %v180 = vmul.f32 %v179, 0.6931472
    %v181 = vadd.f32 %v173, %v180
    %v182 = vpack.c.bf16 %v181, %v181
    %v183 = vld [vmem:[#allocation7] sm:$0xf]
    %v184 = vld [vmem:[#allocation7 + $0x4] sm:$0xf]
    %v185 = vld [vmem:[#allocation7 + $0x8] sm:$0xf]
    %v186 = vld [vmem:[#allocation7 + $0xc] sm:$0xf]
    %v187 = vld [vmem:[#allocation7 + $0x10] sm:$0xf]
    %v188 = vld [vmem:[#allocation7 + $0x14] sm:$0xf]
    %v189 = vld [vmem:[#allocation7 + $0x18] sm:$0xf]
    %v190 = vld [vmem:[#allocation7 + $0x1c] sm:$0xf]
    %v191 = vld [vmem:[#allocation7 + $0x20] sm:$0xf]
    %v192 = vld [vmem:[#allocation7 + $0x24] sm:$0xf]
    %v193 = vld [vmem:[#allocation7 + $0x28] sm:$0xf]
    %v194 = vld [vmem:[#allocation7 + $0x2c] sm:$0xf]
    %v195 = vld [vmem:[#allocation7 + $0x30] sm:$0xf]
    %v196 = vld [vmem:[#allocation7 + $0x34] sm:$0xf]
    %v197 = vld [vmem:[#allocation7 + $0x38] sm:$0xf]
    %v198 = vld [vmem:[#allocation7 + $0x3c] sm:$0xf]
    %v199 = vld [vmem:[%s4] sm:$0x1]
    %v201 = vlaneseq
    %v202 = vshrl.u32 %v201, 7
    %v203 = vsub.s32 0, %v202
    %v204 = vrot.slane %v199, %v203
    %v222 = vunpack.c.l.b16 %v183
    %v223 = vunpack.c.l.b16 %v184
    %v224 = vunpack.c.l.b16 %v185
    %v225 = vunpack.c.l.b16 %v186
    %v226 = vunpack.c.l.b16 %v187
    %v227 = vunpack.c.l.b16 %v188
    %v228 = vunpack.c.l.b16 %v189
    %v229 = vunpack.c.l.b16 %v190
    %v230 = vunpack.c.l.b16 %v191
    %v231 = vunpack.c.l.b16 %v192
    %v232 = vunpack.c.l.b16 %v193
    %v233 = vunpack.c.l.b16 %v194
    %v234 = vunpack.c.l.b16 %v195
    %v235 = vunpack.c.l.b16 %v196
    %v236 = vunpack.c.l.b16 %v197
    %v237 = vunpack.c.l.b16 %v198
    %v238 = vpack.c.b16 %v223, %v222
    %v239 = vpack.c.b16 %v225, %v224
    %v240 = vpack.c.b16 %v227, %v226
    %v241 = vpack.c.b16 %v229, %v228
    %v242 = vpack.c.b16 %v231, %v230
    %v243 = vpack.c.b16 %v233, %v232
    %v244 = vpack.c.b16 %v235, %v234
    %v245 = vpack.c.b16 %v237, %v236
    %254 = vmatprep.subr.bf16.mxu0 0
    %255 = vmatpush1.bf16.msra.mxu0 %v238
    %256 = vmatprep.subr.bf16.mxu0 0
    %257 = vmatpush1.bf16.msra.mxu0 %v239
    %258 = vmatprep.subr.bf16.mxu0 0
    %259 = vmatpush1.bf16.msra.mxu0 %v240
    %260 = vmatprep.subr.bf16.mxu0 0
    %261 = vmatpush1.bf16.msra.mxu0 %v241
    %262 = vmatprep.subr.bf16.mxu0 0
    %263 = vmatpush1.bf16.msra.mxu0 %v242
    %264 = vmatprep.subr.bf16.mxu0 0
    %265 = vmatpush1.bf16.msra.mxu0 %v243
    %266 = vmatprep.subr.bf16.mxu0 0
    %267 = vmatpush1.bf16.msra.mxu0 %v244
    %268 = vmatprep.subr.bf16.mxu0 0
    %269 = vmatpush1.bf16.msra.mxu0 %v245
    %270 = vmatprep.subr.bf16.mxu0 0
    %271 = vmatpush1.bf16.msra.mxu0 0
    %272 = vmatprep.subr.bf16.mxu0 0
    %273 = vmatpush1.bf16.msra.mxu0 0
    %274 = vmatprep.subr.bf16.mxu0 0
    %275 = vmatpush1.bf16.msra.mxu0 0
    %276 = vmatprep.subr.bf16.mxu0 0
    %277 = vmatpush1.bf16.msra.mxu0 0
    %278 = vmatprep.subr.bf16.mxu0 0
    %279 = vmatpush1.bf16.msra.mxu0 0
    %280 = vmatprep.subr.bf16.mxu0 0
    %281 = vmatpush1.bf16.msra.mxu0 0
    %282 = vmatprep.subr.bf16.mxu0 0
    %283 = vmatpush1.bf16.msra.mxu0 0
    %284 = vmatprep.subr.bf16.mxu0 0
    %285 = vmatpush1.bf16.msra.mxu0 0
    %286 = vmatprep.mubr.bf16.mxu0 0
    %287 = vmatmul.mubr.bf16.gmra.mrb[0].mxu0 %v182
    %v288 = vpop.f32.mrb[0].mxu0
    %v289 = vadd.f32 %v204, %v288
    %v290 = vpop.f32.mrb[0].mxu0
    %v291 = vpop.f32.mrb[0].mxu0
    %v292 = vpop.f32.mrb[0].mxu0
    %293 = vdwg.mxu0
    %294 = vst [vmem:[#allocation8] sm:$0xff] %v289
    // Predicated region
    $region34: #{tpu_custom_call.1} parent=1 // pred_check
      _
    $region35: #{tpu_custom_call.1} parent=1 // pred_check_branch
      %296 = sbr.rel (0) target = $region37
    $region36: #{tpu_custom_call.1} parent=1 // pred_region
      %s298 = ssub.s32 128, 128
      %299 = vsyncadd [#allocation4], %s298
      %s301 = sshll.u32 [#allocation8], 4
      %s302 = int_to_ptr.vmem [resolvable:$true] %s301
      %304 = dma.vmem_to_hbm [thread:$0]  %s302, 128, %s5, [#allocation4]
    $region37: #{tpu_custom_call.1} parent=1 // pred_fallthru
      _
    // Predicated region
    $region38: #{tpu_custom_call.1} parent=1 // pred_check
      _
    $region39: #{tpu_custom_call.1} parent=1 // pred_check_branch
      %306 = sbr.rel (0) target = $region41
    $region40: #{tpu_custom_call.1} parent=1 // pred_region
      %307 = dma.done [#allocation4], 128
    $region41: #{tpu_custom_call.1} parent=1 // pred_fallthru
      _
    %308 = vsyncpa [#allocation3], 1
    %309 = vsyncpa [#allocation6], 1
    %310 = vsyncpa [#allocation4], 1

</llo_original>
